<compile_context>
chip_gen: v6e
topology: v6e:2x2x1
jax: 0.10.0
libtpu: 0.0.40
codegen_flags: <defaults>
</compile_context>

<pallas_src>
import functools

import jax
import jax.numpy as jnp
from jax.experimental import pallas as pl
from jax.experimental.pallas import tpu as pltpu


def _round_up(v, m):
    return (v + m - 1) // m * m


# ---------------------------------------------------------------------------
# Kernels
# ---------------------------------------------------------------------------

def _pairwise_products(u12, r1, r2):
    """p[b, a*r2 + c] = u1[b, a] * u2[b, c], with u12 = [u1 | u2]."""
    u1 = u12[:, :r1]
    u2 = u12[:, r1:r1 + r2]
    # Lane-dim concat of r1 broadcast-multiplies: cheap VPU work, no MXU pushes,
    # guaranteed Mosaic lowering (no cross-layout reshape).
    # TODO(synk): for very large r1 (hundreds) build p via broadcast+reshape in
    # one expression (or tile r1 on the grid) to avoid the Python unroll.
    return jnp.concatenate([u1[:, a:a + 1] * u2 for a in range(r1)], axis=-1)


def _bilinear_fused_kernel(x_ref, f12_ref, w_ref, o_ref, *, r1, r2):
    # x_ref:   (TB, n)        batch tile of inputs
    # f12_ref: (n, r1+r2)     [f1 | f2], resident across the grid
    # w_ref:   (r1*r2, TO)    Tucker core with f3 folded in, zero-padded lane-dense
    # o_ref:   (TB, TO)       output tile (lane-dense -> unmasked vector stores)
    x = x_ref[...]
    u12 = jnp.dot(x, f12_ref[...], preferred_element_type=jnp.float32)   # (TB, r1+r2)
    p = _pairwise_products(u12, r1, r2)                                   # (TB, r1*r2)
    o_ref[...] = jnp.dot(p, w_ref[...], preferred_element_type=jnp.float32)
    # TODO(synk): bias=False is the module default; a bias would be a broadcast
    # add of a (1, TO) row here.


def _bilinear_lowrank_kernel(x_ref, f12_ref, core2_ref, f3t_ref, o_ref, *, r1, r2):
    # Two-stage path for very large r1*r2*out, where folding f3 into the core
    # would defeat the low-rank memory savings.
    x = x_ref[...]
    u12 = jnp.dot(x, f12_ref[...], preferred_element_type=jnp.float32)
    p = _pairwise_products(u12, r1, r2)                                   # (TB, r1*r2)
    t = jnp.dot(p, core2_ref[...], preferred_element_type=jnp.float32)    # (TB, r3)
    o_ref[...] = jnp.dot(t, f3t_ref[...], preferred_element_type=jnp.float32)


# ---------------------------------------------------------------------------
# Tile selection
# ---------------------------------------------------------------------------

_VMEM_BUDGET = 8 << 20    # conservative: fits default scoped VMEM on v5e/v6e/v7x
_VMEM_LIMIT = 32 << 20    # explicit scoped limit, <= physical VMEM on all chips
_TB_CAP = 1024            # batch-tile cap (multiple of 256 for the MXU M dim)
_TO_CAP = 4096            # out-tile cap in lanes


def _choose_to(out_p, to_cap=_TO_CAP):
    """Lane tile for the output dim: multiple of 128 dividing out_p."""
    if out_p <= to_cap:
        return out_p
    for to in range((to_cap // 128) * 128, 127, -128):
        if out_p % to == 0:
            return to
    return 128


def _choose_tb(B, tb_max):
    """Batch tile: multiple of 8, <= tb_max.  Prefers >= 2 grid steps when
    B >= 16 (feeds both v7x TensorCores) and a divisor of the 8-rounded batch
    (avoids padding x rows)."""
    tb_max = max(8, (tb_max // 8) * 8)
    b8 = _round_up(B, 8)
    if B < 16:
        return min(b8, tb_max)
    target = min(tb_max, _round_up((B + 1) // 2, 8))
    lo = max(8, (target * 3 // 4) // 8 * 8)
    for tb in range(target, lo - 1, -8):
        if b8 % tb == 0:
            return tb
    return target


# ---------------------------------------------------------------------------
# Forward wrappers
# ---------------------------------------------------------------------------

@functools.partial(jax.jit, static_argnames=("r1", "r2", "out"))
def _forward_fused(x, f12, w, *, r1, r2, out):
    B, n = x.shape
    out_p = w.shape[1]
    TO = _choose_to(out_p)
    resident = 2 * 4 * (n * (r1 + r2) + r1 * r2 * TO)     # double-buffered params
    per_row = 2 * 4 * (n + TO)                            # double-buffered x + out
    TB = _choose_tb(B, min(_TB_CAP, max(8, (_VMEM_BUDGET - resident) // per_row)))
    B_pad = _round_up(B, TB)
    if B_pad != B:
        x = jnp.pad(x, ((0, B_pad - B), (0, 0)))          # padded rows -> zero output
    kernel = functools.partial(_bilinear_fused_kernel, r1=r1, r2=r2)
    y = pl.pallas_call(
        kernel,
        out_shape=jax.ShapeDtypeStruct((B_pad, out_p), jnp.float32),
        grid=(B_pad // TB, out_p // TO),
        in_specs=[
            pl.BlockSpec((TB, n), lambda i, j: (i, 0)),            # x batch tile
            pl.BlockSpec((n, r1 + r2), lambda i, j: (0, 0)),       # [f1 | f2]
            pl.BlockSpec((r1 * r2, TO), lambda i, j: (0, j)),      # fused core
        ],
        out_specs=pl.BlockSpec((TB, TO), lambda i, j: (i, j)),
        compiler_params=pltpu.CompilerParams(
            dimension_semantics=("parallel", "parallel"),
            vmem_limit_bytes=_VMEM_LIMIT,
        ),
    )(x, f12, w)
    if B_pad != B or out_p != out:
        y = y[:B, :out]
    return y


@functools.partial(jax.jit, static_argnames=("r1", "r2", "out"))
def _forward_lowrank(x, f12, core2, f3t, *, r1, r2, out):
    B, n = x.shape
    r3 = core2.shape[1]
    out_p = f3t.shape[1]
    TO = _choose_to(out_p)
    resident = 2 * 4 * (n * (r1 + r2) + r1 * r2 * r3 + r3 * TO)
    per_row = 2 * 4 * (n + TO)
    TB = _choose_tb(B, min(_TB_CAP, max(8, (_VMEM_BUDGET - resident) // per_row)))
    B_pad = _round_up(B, TB)
    if B_pad != B:
        x = jnp.pad(x, ((0, B_pad - B), (0, 0)))
    kernel = functools.partial(_bilinear_lowrank_kernel, r1=r1, r2=r2)
    y = pl.pallas_call(
        kernel,
        out_shape=jax.ShapeDtypeStruct((B_pad, out_p), jnp.float32),
        grid=(B_pad // TB, out_p // TO),
        in_specs=[
            pl.BlockSpec((TB, n), lambda i, j: (i, 0)),
            pl.BlockSpec((n, r1 + r2), lambda i, j: (0, 0)),
            pl.BlockSpec((r1 * r2, r3), lambda i, j: (0, 0)),
            pl.BlockSpec((r3, TO), lambda i, j: (0, j)),
        ],
        out_specs=pl.BlockSpec((TB, TO), lambda i, j: (i, j)),
        compiler_params=pltpu.CompilerParams(
            dimension_semantics=("parallel", "parallel"),
            vmem_limit_bytes=_VMEM_LIMIT,
        ),
    )(x, f12, core2, f3t)
    if B_pad != B or out_p != out:
        y = y[:B, :out]
    return y


def prepare_bilinear_params(core, f1, f2, f3, fuse_limit_bytes=8 << 20):
    """One-time parameter prep (hoisted out of the per-call path).

    core: (r1, r2, r3), f1: (n, r1), f2: (n, r2), f3: (out, r3), all f32.
    When the fused (r1*r2, out_p) weight is small, f3 is folded into the core
    so the kernel runs a single weight matmul; otherwise the two-stage
    low-rank form is kept.
    """
    r1, r2, r3 = core.shape
    out = f3.shape[0]
    out_p = _round_up(out, 128)          # lane-dense output -> unmasked stores
    f12 = jnp.concatenate([f1, f2], axis=1)                    # (n, r1+r2)
    if r1 * r2 * out_p * 4 <= fuse_limit_bytes:
        w = jnp.einsum("abc,oc->abo", core, f3).reshape(r1 * r2, out)
        w = jnp.pad(w, ((0, 0), (0, out_p - out)))             # (r1*r2, out_p)
        return dict(kind="fused", f12=f12, w=w, r1=r1, r2=r2, out=out)
    core2 = core.reshape(r1 * r2, r3)
    f3t = jnp.pad(f3.T, ((0, 0), (0, out_p - out)))            # (r3, out_p)
    return dict(kind="lowrank", f12=f12, core2=core2, f3t=f3t, r1=r1, r2=r2, out=out)


def bilinear_forward(x, params):
    """y[b, o] = sum_{i,j} x[b,i] x[b,j] W[i,j,o] with W = Tucker(core; f1, f2, f3).

    x: (B, n) f32 (any leading PyTorch dims flattened into B). Returns (B, out) f32.
    """
    if params["kind"] == "fused":
        return _forward_fused(x, params["f12"], params["w"],
                              r1=params["r1"], r2=params["r2"], out=params["out"])
    return _forward_lowrank(x, params["f12"], params["core2"], params["f3t"],
                            r1=params["r1"], r2=params["r2"], out=params["out"])


def make_tucker_factors(key, n, out, rank_frac=0.05, std=0.00075):
    """Low-rank (Tucker) parameterization of the TRL weight; the kernel never
    reconstructs the dense (n, n, out) W."""
    def frac_rank(d):
        return max(1, int(round(rank_frac * d)))

    r1, r2, r3 = frac_rank(n), frac_rank(n), frac_rank(out)
    k_core, k1, k2, k3 = jax.random.split(key, 4)
    core = jax.random.normal(k_core, (r1, r2, r3), jnp.float32) * std
    f1 = jax.random.normal(k1, (n, r1), jnp.float32) * std
    f2 = jax.random.normal(k2, (n, r2), jnp.float32) * std
    f3 = jax.random.normal(k3, (out, r3), jnp.float32) * std
    return core, f1, f2, f3


if __name__ == "__main__":
    key = jax.random.PRNGKey(0)
    k_x, k_w = jax.random.split(key)

    B, n = 8, 32          # batch (leading PyTorch dims flattened), input features
    out = n               # out=None in the module -> out == n

    x = jax.random.normal(k_x, (B, n), jnp.float32)
    core, f1, f2, f3 = make_tucker_factors(k_w, n, out, rank_frac=0.05, std=0.00075)

    params = prepare_bilinear_params(core, f1, f2, f3)   # one-time prep
    y = bilinear_forward(x, params)
    y = jax.block_until_ready(y)

    # Reference: reconstruct the dense W and contract the quadratic form,
    #   y[b,o] = sum_{i,j} x[b,i] x[b,j] W[i,j,o]
    hi = jax.lax.Precision.HIGHEST
    w_full = jnp.einsum("abc,ia,jb,oc->ijo", core, f1, f2, f3, precision=hi)
    y_ref = jnp.einsum("bi,bj,ijo->bo", x, x, w_full, precision=hi)

    assert y.shape == (B, out)
    assert jnp.allclose(y, y_ref, rtol=2e-3, atol=1e-14), (
        float(jnp.max(jnp.abs(y - y_ref)))
    )
    print("KERNEL_OK")
</pallas_src>

<mosaic_0001>
module attributes {stable_mosaic.version = 11 : i64} {
  func.func @_bilinear_fused_kernel(%arg0: i32, %arg1: i32, %arg2: memref<8x32xf32, #tpu.memory_space<vmem>>, %arg3: memref<32x4xf32, #tpu.memory_space<vmem>>, %arg4: memref<4x128xf32, #tpu.memory_space<vmem>>, %arg5: memref<8x128xf32, #tpu.memory_space<vmem>>) attributes {dimension_semantics = [#tpu.dimension_semantics<parallel>, #tpu.dimension_semantics<parallel>], iteration_bounds = array<i64: 1, 1>, scalar_prefetch = 0 : i64, scratch_operands = 0 : i64, tpu.core_type = #tpu.core_type<tc>, window_params = [{transform_indices = @transform_0, window_bounds = array<i64: 8, 32>}, {pipeline_mode = #tpu.pipeline_mode<synchronous>, transform_indices = @transform_1, window_bounds = array<i64: 32, 4>}, {transform_indices = @transform_2, window_bounds = array<i64: 4, 128>}, {transform_indices = @transform_3, window_bounds = array<i64: 8, 128>}]} {
    %c0 = arith.constant 0 : index
    %c0_0 = arith.constant 0 : index
    %0 = vector.load %arg2[%c0, %c0_0] : memref<8x32xf32, #tpu.memory_space<vmem>>, vector<8x32xf32>
    %c0_1 = arith.constant 0 : index
    %c0_2 = arith.constant 0 : index
    %1 = vector.load %arg3[%c0_1, %c0_2] : memref<32x4xf32, #tpu.memory_space<vmem>>, vector<32x4xf32>
    %cst = arith.constant dense<0.000000e+00> : vector<8x4xf32>
    %2 = tpu.matmul %0, %1, %cst {dimension_numbers = #tpu.dot_dimension_numbers<[1], [0], [0], [1], [0, 0, 1, 1], [], []>} : vector<8x32xf32>, vector<32x4xf32>, vector<8x4xf32> -> vector<8x4xf32>
    %3 = vector.extract_strided_slice %2 {offsets = [0, 0], sizes = [8, 2], strides = [1, 1]} : vector<8x4xf32> to vector<8x2xf32>
    %4 = vector.extract_strided_slice %2 {offsets = [0, 2], sizes = [8, 2], strides = [1, 1]} : vector<8x4xf32> to vector<8x2xf32>
    %5 = vector.extract_strided_slice %3 {offsets = [0, 0], sizes = [8, 1], strides = [1, 1]} : vector<8x2xf32> to vector<8x1xf32>
    %6 = vector.broadcast %5 : vector<8x1xf32> to vector<8x2xf32>
    %7 = arith.mulf %6, %4 : vector<8x2xf32>
    %8 = vector.extract_strided_slice %3 {offsets = [0, 1], sizes = [8, 1], strides = [1, 1]} : vector<8x2xf32> to vector<8x1xf32>
    %9 = vector.broadcast %8 : vector<8x1xf32> to vector<8x2xf32>
    %10 = arith.mulf %9, %4 : vector<8x2xf32>
    %11 = tpu.concatenate %7, %10 in 1 : vector<8x2xf32>, vector<8x2xf32> -> vector<8x4xf32>
    %c0_3 = arith.constant 0 : index
    %c0_4 = arith.constant 0 : index
    %12 = vector.load %arg4[%c0_3, %c0_4] : memref<4x128xf32, #tpu.memory_space<vmem>>, vector<4x128xf32>
    %cst_5 = arith.constant dense<0.000000e+00> : vector<8x128xf32>
    %13 = tpu.matmul %11, %12, %cst_5 {dimension_numbers = #tpu.dot_dimension_numbers<[1], [0], [0], [1], [0, 0, 1, 1], [], []>} : vector<8x4xf32>, vector<4x128xf32>, vector<8x128xf32> -> vector<8x128xf32>
    %c0_6 = arith.constant 0 : index
    %c0_7 = arith.constant 0 : index
    %14 = vector.load %arg5[%c0_6, %c0_7] : memref<8x128xf32, #tpu.memory_space<vmem>>, vector<8x128xf32>
    tpu.vector_store %arg5[%c0_6, %c0_7], %13 {strides = array<i32>} : memref<8x128xf32, #tpu.memory_space<vmem>>, vector<8x128xf32>,
    return
  }
  func.func @transform_0(%arg0: i32, %arg1: i32) -> (i32, i32) {
    %c0_i32 = arith.constant 0 : i32
    %c0_i32_0 = arith.constant 0 : i32
    return %arg0, %c0_i32 : i32, i32
  }
  func.func @transform_1(%arg0: i32, %arg1: i32) -> (i32, i32) {
    %c0_i32 = arith.constant 0 : i32
    %c0_i32_0 = arith.constant 0 : i32
    %c0_i32_1 = arith.constant 0 : i32
    return %c0_i32, %c0_i32_0 : i32, i32
  }
  func.func @transform_2(%arg0: i32, %arg1: i32) -> (i32, i32) {
    %c0_i32 = arith.constant 0 : i32
    %c0_i32_0 = arith.constant 0 : i32
    return %c0_i32, %arg1 : i32, i32
  }
  func.func @transform_3(%arg0: i32, %arg1: i32) -> (i32, i32) {
    %c0_i32 = arith.constant 0 : i32
    return %arg0, %arg1 : i32, i32
  }
}

</mosaic_0001>

<llo_original>
// kernel: _forward_fused.1
$region0: #{_forward_fused.1}
  #allocation0 [shape = 'u32[]', space=smem, size = 0x4, offset = 0x4, fixed_abs, tag = 'smem constant byte address 0x4 - core index']
  #allocation1 [shape = 'u32[144,128]{1,0:T(1,128)}', space=vmem, size = 0x12000, scoped, tag = 'internal scratch']
  %s0 = inlined_call_operand.vmem [shape: f32[8,32], index: 0, kind: input, shape index: {}]
  %s1 = inlined_call_operand.vmem [shape: f32[32,4], index: 1, kind: input, shape index: {}]
  %s2 = inlined_call_operand.vmem [shape: f32[4,128], index: 2, kind: input, shape index: {}]
  %s3 = inlined_call_operand.hbm [shape: f32[8,128], index: 3, kind: output, shape index: {}]
  %s4 = sld [smem:[#allocation0]]
  $region22: #{_forward_fused.1} parent=0
    _
  %s6 = ssub.s32 1, %s4
  %s7 = scalar_select 0, %s6, %s4
  $region1: #{_forward_fused.1} parent=0
    #allocation2 [shape = 'u8[4096]{0}', space=vmem, size = 0x1000, scoped, tag = 'output window, operand 0, single buffered']
    #allocation3 [shape = 's32[1]{0}', space=sflag, size = 0x4, scoped, tag = 'scoped memory for _forward_fused.1']
    %8 = vsyncpa [#allocation3], 0
    // Predicated region
    $region2: #{_forward_fused.1} parent=1 // pred_check
      _
    $region3: #{_forward_fused.1} parent=1 // pred_check_branch
      %10 = sbr.rel (0) target = $region5
    $region4: #{_forward_fused.1} parent=1 // pred_region
      _
    $region5: #{_forward_fused.1} parent=1 // pred_fallthru
      _
    // Predicated region
    $region6: #{_forward_fused.1} parent=1 // pred_check
      _
    $region7: #{_forward_fused.1} parent=1 // pred_check_branch
      %12 = sbr.rel (0) target = $region9
    $region8: #{_forward_fused.1} parent=1 // pred_region
      _
    $region9: #{_forward_fused.1} parent=1 // pred_fallthru
      _
    // Predicated region
    $region10: #{_forward_fused.1} parent=1 // pred_check
      _
    $region11: #{_forward_fused.1} parent=1 // pred_check_branch
      %14 = sbr.rel (0) target = $region13
    $region12: #{_forward_fused.1} parent=1 // pred_region
      _
    $region13: #{_forward_fused.1} parent=1 // pred_fallthru
      _
    %v15 = vld [vmem:[%s0] sm:$0xff]
    %v16 = vld [vmem:[%s1] sm:$0xff]
    %v17 = vld [vmem:[%s1 + $0x8] sm:$0xff]
    %v18 = vld [vmem:[%s1 + $0x10] sm:$0xff]
    %v19 = vld [vmem:[%s1 + $0x18] sm:$0xff]
    %vm20 = vcmask 261120
    %v22 = vsel %vm20, %v15, 0
    %24 = vmatprep.subr.mxu0 0.0
    %25 = vmatpush1.msra.mxu0 0.0
    %26 = vmatprep.subr.mxu0 0.0
    %27 = vmatpush1.msra.mxu0 0.0
    %28 = vmatprep.subr.mxu0 0.0
    %29 = vmatpush1.msra.mxu0 0.0
    %30 = vmatprep.subr.mxu0 0.0
    %31 = vmatpush1.msra.mxu0 0.0
    %32 = vmatprep.subr.mxu0 0.0
    %33 = vmatpush1.msra.mxu0 0.0
    %34 = vmatprep.subr.mxu0 0.0
    %35 = vmatpush1.msra.mxu0 0.0
    %36 = vmatprep.subr.mxu0 0.0
    %37 = vmatpush1.msra.mxu0 0.0
    %38 = vmatprep.subr.mxu0 0.0
    %39 = vmatpush1.msra.mxu0 0.0
    %40 = vmatprep.subr.mxu0 0.0
    %41 = vmatpush1.msra.mxu0 0.0
    %42 = vmatprep.subr.mxu0 0.0
    %43 = vmatpush1.msra.mxu0 0.0
    %44 = vmatprep.subr.mxu0 0.0
    %45 = vmatpush1.msra.mxu0 0.0
    %46 = vmatprep.subr.mxu0 0.0
    %47 = vmatpush1.msra.mxu0 0.0
    %48 = vmatprep.subr.mxu0 0.0
    %49 = vmatpush1.msra.mxu0 %v19
    %50 = vmatprep.subr.mxu0 0.0
    %51 = vmatpush1.msra.mxu0 %v18
    %52 = vmatprep.subr.mxu0 0.0
    %53 = vmatpush1.msra.mxu0 %v17
    %54 = vmatprep.subr.mxu0 0.0
    %55 = vmatpush1.msra.mxu0 %v16
    %56 = vmatprep.subr.mxu0 0.0
    %57 = vmatpush2.msra.mxu0 0.0
    %58 = vmatprep.subr.mxu0 0.0
    %59 = vmatpush2.msra.mxu0 0.0
    %60 = vmatprep.subr.mxu0 0.0
    %61 = vmatpush2.msra.mxu0 0.0
    %62 = vmatprep.subr.mxu0 0.0
    %63 = vmatpush2.msra.mxu0 0.0
    %64 = vmatprep.subr.mxu0 0.0
    %65 = vmatpush2.msra.mxu0 0.0
    %66 = vmatprep.subr.mxu0 0.0
    %67 = vmatpush2.msra.mxu0 0.0
    %68 = vmatprep.subr.mxu0 0.0
    %69 = vmatpush2.msra.mxu0 0.0
    %70 = vmatprep.subr.mxu0 0.0
    %71 = vmatpush2.msra.mxu0 0.0
    %72 = vmatprep.subr.mxu0 0.0
    %73 = vmatpush2.msra.mxu0 0.0
    %74 = vmatprep.subr.mxu0 0.0
    %75 = vmatpush2.msra.mxu0 0.0
    %76 = vmatprep.subr.mxu0 0.0
    %77 = vmatpush2.msra.mxu0 0.0
    %78 = vmatprep.subr.mxu0 0.0
    %79 = vmatpush2.msra.mxu0 0.0
    %80 = vmatprep.subr.mxu0 0.0
    %81 = vmatpush2.msra.mxu0 0.0
    %82 = vmatprep.subr.mxu0 0.0
    %83 = vmatpush2.msra.mxu0 0.0
    %84 = vmatprep.subr.mxu0 0.0
    %85 = vmatpush2.msra.mxu0 0.0
    %86 = vmatprep.subr.mxu0 0.0
    %87 = vmatpush2.msra.mxu0 0.0
    %88 = vmatprep.mubr.f32.mxu0 0.0
    %89 = vmatmul.mubr.f32.gmra.mxu0 %v22
    %v90 = vpop.f32.mrf.mxu0
    %v91 = vadd.f32 0.0, %v90
    %v92 = vpop.f32.mrf.mxu0
    %93 = vdwg.mxu0
    %95 = vset.pattern.permute.xlu0 0
    %96 = vperm.xlu0 %95, %v91
    %v97 = vpop.permute.xlu0 %96
    %v99 = vmul.f32 %v97, %v91
    %100 = vset.pattern.permute.xlu0 1
    %101 = vperm.xlu0 %100, %v91
    %v102 = vpop.permute.xlu0 %101
    %v104 = vmul.f32 %v102, %v91
    %106 = vrot.lane.b32.xlu0 %v99, 126
    %v107 = vpop.permute.xlu0 %106
    %vm109 = vcmask 15360
    %v110 = vsel %vm109, %v107, %v104
    %v111 = vld [vmem:[%s2] sm:$0xf]
    %vm112 = vcmask 31744
    %v114 = vsel %vm112, %v110, 0
    %vm116 = vcmask 1043456
    %v118 = vsel %vm116, %v111, 0
    %120 = vmatprep.subr.mxu0 0.0
    %121 = vmatpush1.msra.mxu0 0.0
    %122 = vmatprep.subr.mxu0 0.0
    %123 = vmatpush1.msra.mxu0 0.0
    %124 = vmatprep.subr.mxu0 0.0
    %125 = vmatpush1.msra.mxu0 0.0
    %126 = vmatprep.subr.mxu0 0.0
    %127 = vmatpush1.msra.mxu0 0.0
    %128 = vmatprep.subr.mxu0 0.0
    %129 = vmatpush1.msra.mxu0 0.0
    %130 = vmatprep.subr.mxu0 0.0
    %131 = vmatpush1.msra.mxu0 0.0
    %132 = vmatprep.subr.mxu0 0.0
    %133 = vmatpush1.msra.mxu0 0.0
    %134 = vmatprep.subr.mxu0 0.0
    %135 = vmatpush1.msra.mxu0 0.0
    %136 = vmatprep.subr.mxu0 0.0
    %137 = vmatpush1.msra.mxu0 0.0
    %138 = vmatprep.subr.mxu0 0.0
    %139 = vmatpush1.msra.mxu0 0.0
    %140 = vmatprep.subr.mxu0 0.0
    %141 = vmatpush1.msra.mxu0 0.0
    %142 = vmatprep.subr.mxu0 0.0
    %143 = vmatpush1.msra.mxu0 0.0
    %144 = vmatprep.subr.mxu0 0.0
    %145 = vmatpush1.msra.mxu0 0.0
    %146 = vmatprep.subr.mxu0 0.0
    %147 = vmatpush1.msra.mxu0 0.0
    %148 = vmatprep.subr.mxu0 0.0
    %149 = vmatpush1.msra.mxu0 0.0
    %150 = vmatprep.subr.mxu0 0.0
    %151 = vmatpush1.msra.mxu0 %v118
    %152 = vmatprep.subr.mxu0 0.0
    %153 = vmatpush2.msra.mxu0 0.0
    %154 = vmatprep.subr.mxu0 0.0
    %155 = vmatpush2.msra.mxu0 0.0
    %156 = vmatprep.subr.mxu0 0.0
    %157 = vmatpush2.msra.mxu0 0.0
    %158 = vmatprep.subr.mxu0 0.0
    %159 = vmatpush2.msra.mxu0 0.0
    %160 = vmatprep.subr.mxu0 0.0
    %161 = vmatpush2.msra.mxu0 0.0
    %162 = vmatprep.subr.mxu0 0.0
    %163 = vmatpush2.msra.mxu0 0.0
    %164 = vmatprep.subr.mxu0 0.0
    %165 = vmatpush2.msra.mxu0 0.0
    %166 = vmatprep.subr.mxu0 0.0
    %167 = vmatpush2.msra.mxu0 0.0
    %168 = vmatprep.subr.mxu0 0.0
    %169 = vmatpush2.msra.mxu0 0.0
    %170 = vmatprep.subr.mxu0 0.0
    %171 = vmatpush2.msra.mxu0 0.0
    %172 = vmatprep.subr.mxu0 0.0
    %173 = vmatpush2.msra.mxu0 0.0
    %174 = vmatprep.subr.mxu0 0.0
    %175 = vmatpush2.msra.mxu0 0.0
    %176 = vmatprep.subr.mxu0 0.0
    %177 = vmatpush2.msra.mxu0 0.0
    %178 = vmatprep.subr.mxu0 0.0
    %179 = vmatpush2.msra.mxu0 0.0
    %180 = vmatprep.subr.mxu0 0.0
    %181 = vmatpush2.msra.mxu0 0.0
    %182 = vmatprep.subr.mxu0 0.0
    %183 = vmatpush2.msra.mxu0 0.0
    %184 = vmatprep.mubr.f32.mxu0 0.0
    %185 = vmatmul.mubr.f32.gmra.mxu0 %v114
    %v186 = vpop.f32.mrf.mxu0
    %v187 = vadd.f32 0.0, %v186
    %v188 = vpop.f32.mrf.mxu0
    %189 = vdwg.mxu0
    %190 = vst [vmem:[#allocation2] sm:$0xff] %v187
    // Predicated region
    $region14: #{_forward_fused.1} parent=1 // pred_check
      _
    $region15: #{_forward_fused.1} parent=1 // pred_check_branch
      %192 = sbr.rel (0) target = $region17
    $region16: #{_forward_fused.1} parent=1 // pred_region
      %s194 = ssub.s32 128, 128
      %195 = vsyncadd [#allocation3], %s194
      %s197 = sshll.u32 [#allocation2], 4
      %s198 = int_to_ptr.vmem [resolvable:$true] %s197
      %200 = dma.vmem_to_hbm [thread:$0]  %s198, 128, %s3, [#allocation3]
    $region17: #{_forward_fused.1} parent=1 // pred_fallthru
      _
    // Predicated region
    $region18: #{_forward_fused.1} parent=1 // pred_check
      _
    $region19: #{_forward_fused.1} parent=1 // pred_check_branch
      %202 = sbr.rel (0) target = $region21
    $region20: #{_forward_fused.1} parent=1 // pred_region
      %203 = dma.done [#allocation3], 128
    $region21: #{_forward_fused.1} parent=1 // pred_fallthru
      _
    %204 = vsyncpa [#allocation3], 1

</llo_original>
